<compile_context>
chip_gen: v7x
topology: tpu7x:2x2x1
jax: 0.10.0
libtpu: 0.0.40
codegen_flags: <defaults>
</compile_context>

<pallas_src>
import jax
import jax.numpy as jnp
from jax.experimental import pallas as pl
from jax.experimental.pallas import tpu as pltpu

EPS = 1e-5  # nn.InstanceNorm1d default eps


# ------------------------- tiling helpers -------------------------

def _largest_divisor_leq(n: int, cap: int) -> int:
    cap = max(1, min(n, cap))
    for d in range(cap, 0, -1):
        if n % d == 0:
            return d
    return 1


def _vmem_capacity_bytes() -> int:
    """Physical VMEM per core (128 MiB on v5e/v6e, 64 MiB on v7x)."""
    try:
        info = pltpu.get_tpu_info()
        return int(getattr(info, "vmem_capacity_bytes", 128 * 1024 * 1024))
    except Exception:
        return 128 * 1024 * 1024


def _per_tile_budget_bytes(phys_vmem: int) -> int:
    """Per-DMA-tile byte budget: ~6 MiB on 128 MiB chips, ~4 MiB on v7x."""
    return max(1 << 20, min(6 * 1024 * 1024, phys_vmem // 16))


def _pick_f_tile(F: int, T: int, itemsize: int, budget: int) -> int:
    """Feature tile. Always returns F itself or a multiple of 128 dividing F."""
    if T * F * itemsize <= budget:
        return F                      # one full-feature batch row fits the budget
    if F % 128 == 0:
        units = F // 128
        max_units = max(1, budget // max(1, T * 128 * itemsize))
        return _largest_divisor_leq(units, max_units) * 128
    # TODO(synk): add a T-chunked two-pass (sum/sumsq over an 'arbitrary' T axis)
    # fallback for long-T inputs whose F is not a multiple of 128.
    return F


def _pick_batch_tile(B: int, row_bytes: int, budget: int) -> int:
    cap = max(1, budget // max(1, row_bytes))
    return _largest_divisor_leq(B, cap)


# ------------------------- kernel -------------------------

def _in_seq_kernel(x_ref, g_ref, b_ref, o_ref):
    """Normalize a (BB, T, TF) tile over T per (b, f).

    Single-pass stats (E[x], E[x^2]); gamma folded into `scale`, beta and mean
    folded into `shift`, so the per-element epilogue is one FMA.
    """
    x = x_ref[...].astype(jnp.float32)                       # (BB, T, TF)
    mean = jnp.mean(x, axis=1, keepdims=True)                # (BB, 1, TF)
    mean_sq = jnp.mean(x * x, axis=1, keepdims=True)         # (BB, 1, TF)
    var = jnp.maximum(mean_sq - mean * mean, 0.0)            # biased var (PyTorch IN)
    scale = jax.lax.rsqrt(var + EPS) * g_ref[...]            # (BB, 1, TF)
    shift = b_ref[...] - mean * scale                        # (BB, 1, TF)
    o_ref[...] = (x * scale + shift).astype(o_ref.dtype)


# ------------------------- wrappers -------------------------

def instance_norm_seq(x, gamma, beta):
    B, T, F = x.shape
    g2 = gamma.reshape(1, F).astype(jnp.float32)
    b2 = beta.reshape(1, F).astype(jnp.float32)

    itemsize = jnp.dtype(x.dtype).itemsize                   # real input itemsize
    phys = _vmem_capacity_bytes()
    budget = _per_tile_budget_bytes(phys)

    TF = _pick_f_tile(F, T, itemsize, budget)
    BB = _pick_batch_tile(B, T * TF * itemsize, budget)

    # Megacore: a 1x1 grid would leave one v7x TensorCore idle — force >=2 blocks.
    if (B // BB) * (F // TF) == 1:
        if B > 1:
            BB = _largest_divisor_leq(B, B - 1)               # largest proper divisor
        elif F % 256 == 0:
            TF = F // 2                                       # still a 128-multiple

    grid = (F // TF, B // BB)   # fi outer: gamma/beta blocks constant on inner axis

    # VMEM plan: double-buffered in/out tiles + f32 working copies + headroom.
    tile_elems = BB * T * TF
    plan_bytes = (2 * tile_elems * itemsize        # input tiles (double-buffered)
                  + 2 * tile_elems * itemsize      # output tiles (double-buffered)
                  + 2 * tile_elems * 4             # f32 intermediates
                  + (4 << 20))                     # compiler scratch headroom
    vmem_limit = int(min(max(plan_bytes, 32 << 20), int(phys * 0.75)))

    return pl.pallas_call(
        _in_seq_kernel,
        out_shape=jax.ShapeDtypeStruct((B, T, F), x.dtype),
        grid=grid,
        in_specs=[
            pl.BlockSpec((BB, T, TF), lambda fi, bi: (bi, 0, fi)),
            pl.BlockSpec((1, TF), lambda fi, bi: (0, fi)),
            pl.BlockSpec((1, TF), lambda fi, bi: (0, fi)),
        ],
        out_specs=pl.BlockSpec((BB, T, TF), lambda fi, bi: (bi, 0, fi)),
        compiler_params=pltpu.CompilerParams(
            dimension_semantics=("parallel", "parallel"),
            vmem_limit_bytes=vmem_limit),
    )(x, g2, b2)


def instance_norm_vec(x, gamma, beta):
    """(B, F) path: InstanceNorm over a singleton spatial dim.

    Normalized value is identically 0, so the output is exactly `beta`
    broadcast over the batch; lowered to a plain XLA broadcast per perf review
    (only B*F bytes written — no pallas_call fixed cost or grid overhead).
    PyTorch raises for spatial size 1 in training mode; this mirrors the
    eval-mode forward value. `.squeeze()` matches the PyTorch epilogue.
    """
    B, F = x.shape
    del gamma  # multiplied by an exact zero
    out = jnp.broadcast_to(beta.astype(x.dtype), (B, F))
    return jnp.squeeze(out)


class IN:
    """JAX/Pallas port of linmult IN module (InstanceNorm1d, affine=True)."""

    def __init__(self, feature_dim: int, time_aware: bool, gamma=None, beta=None):
        self.time_aware = time_aware
        # Faithful PyTorch default init: weight=1, bias=0 (overridable for tests).
        self.gamma = (jnp.ones((feature_dim,), jnp.float32)
                      if gamma is None else jnp.asarray(gamma, jnp.float32))
        self.beta = (jnp.zeros((feature_dim,), jnp.float32)
                     if beta is None else jnp.asarray(beta, jnp.float32))

    def __call__(self, x):
        if self.time_aware and x.ndim == 3:
            return instance_norm_seq(x, self.gamma, self.beta)
        return instance_norm_vec(x, self.gamma, self.beta)


# ------------------------- pure-JAX references -------------------------

def _ref_seq(x, g, b):
    mean = jnp.mean(x, axis=1, keepdims=True)
    var = jnp.mean((x - mean) ** 2, axis=1, keepdims=True)
    return (x - mean) / jnp.sqrt(var + EPS) * g + b


def _ref_vec(x, g, b):
    # InstanceNorm over a singleton spatial dim -> 0, then affine, then squeeze.
    return jnp.squeeze(jnp.zeros_like(x) * g + jnp.broadcast_to(b, x.shape))


if __name__ == "__main__":
    key = jax.random.PRNGKey(0)
    k1, k2 = jax.random.split(key)

    B, T, F = 2, 8, 32
    # Non-trivial affine params so the gamma/beta folding is actually exercised.
    gamma = 1.0 + 0.1 * jnp.arange(F, dtype=jnp.float32)
    beta = 0.05 * jnp.arange(F, dtype=jnp.float32)

    # time-aware sequence path: (B, T, F)
    x_seq = jax.random.normal(k1, (B, T, F), dtype=jnp.float32)
    mod_seq = IN(feature_dim=F, time_aware=True, gamma=gamma, beta=beta)
    y_seq = mod_seq(x_seq)
    jax.block_until_ready(y_seq)
    ref_seq = _ref_seq(x_seq, gamma, beta)
    assert y_seq.shape == (B, T, F)
    assert jnp.allclose(y_seq, ref_seq, atol=5e-5, rtol=5e-5)

    # vector path: (B, F)
    x_vec = jax.random.normal(k2, (B, F), dtype=jnp.float32)
    mod_vec = IN(feature_dim=F, time_aware=False, gamma=gamma, beta=beta)
    y_vec = mod_vec(x_vec)
    jax.block_until_ready(y_vec)
    ref_vec = _ref_vec(x_vec, gamma, beta)
    assert y_vec.shape == (B, F)
    assert jnp.allclose(y_vec, ref_vec, atol=1e-6, rtol=1e-6)

    print("KERNEL_OK")
</pallas_src>

<mosaic_0001>
module attributes {stable_mosaic.version = 11 : i64} {
  func.func @_in_seq_kernel(%arg0: i32, %arg1: i32, %arg2: memref<1x8x32xf32, #tpu.memory_space<vmem>>, %arg3: memref<1x32xf32, #tpu.memory_space<vmem>>, %arg4: memref<1x32xf32, #tpu.memory_space<vmem>>, %arg5: memref<1x8x32xf32, #tpu.memory_space<vmem>>) attributes {dimension_semantics = [#tpu.dimension_semantics<parallel>, #tpu.dimension_semantics<parallel>], iteration_bounds = array<i64: 1, 2>, scalar_prefetch = 0 : i64, scratch_operands = 0 : i64, tpu.core_type = #tpu.core_type<tc>, window_params = [{transform_indices = @transform_0, window_bounds = array<i64: 1, 8, 32>}, {transform_indices = @transform_1, window_bounds = array<i64: 1, 32>}, {transform_indices = @transform_2, window_bounds = array<i64: 1, 32>}, {transform_indices = @transform_3, window_bounds = array<i64: 1, 8, 32>}]} {
    %c0 = arith.constant 0 : index
    %c0_0 = arith.constant 0 : index
    %c0_1 = arith.constant 0 : index
    %0 = vector.load %arg2[%c0, %c0_0, %c0_1] : memref<1x8x32xf32, #tpu.memory_space<vmem>>, vector<1x8x32xf32>
    %cst = arith.constant dense<0.000000e+00> : vector<1x32xf32>
    %1 = vector.multi_reduction <add>, %0, %cst [1] : vector<1x8x32xf32> to vector<1x32xf32>
    %2 = vector.shape_cast %1 : vector<1x32xf32> to vector<1x1x32xf32>
    %cst_2 = arith.constant 8.000000e+00 : f32
    %3 = vector.broadcast %cst_2 : f32 to vector<1x1x32xf32>
    %4 = arith.divf %2, %3 : vector<1x1x32xf32>
    %5 = arith.mulf %0, %0 : vector<1x8x32xf32>
    %cst_3 = arith.constant dense<0.000000e+00> : vector<1x32xf32>
    %6 = vector.multi_reduction <add>, %5, %cst_3 [1] : vector<1x8x32xf32> to vector<1x32xf32>
    %7 = vector.shape_cast %6 : vector<1x32xf32> to vector<1x1x32xf32>
    %cst_4 = arith.constant 8.000000e+00 : f32
    %8 = vector.broadcast %cst_4 : f32 to vector<1x1x32xf32>
    %9 = arith.divf %7, %8 : vector<1x1x32xf32>
    %10 = arith.mulf %4, %4 : vector<1x1x32xf32>
    %11 = arith.subf %9, %10 : vector<1x1x32xf32>
    %cst_5 = arith.constant 0.000000e+00 : f32
    %12 = vector.broadcast %cst_5 : f32 to vector<1x1x32xf32>
    %13 = arith.maximumf %11, %12 : vector<1x1x32xf32>
    %cst_6 = arith.constant 9.99999974E-6 : f32
    %14 = vector.broadcast %cst_6 : f32 to vector<1x1x32xf32>
    %15 = arith.addf %13, %14 : vector<1x1x32xf32>
    %16 = math.rsqrt %15 : vector<1x1x32xf32>
    %c0_7 = arith.constant 0 : index
    %c0_8 = arith.constant 0 : index
    %17 = vector.load %arg3[%c0_7, %c0_8] : memref<1x32xf32, #tpu.memory_space<vmem>>, vector<1x32xf32>
    %18 = vector.shape_cast %17 : vector<1x32xf32> to vector<1x1x32xf32>
    %19 = arith.mulf %16, %18 : vector<1x1x32xf32>
    %c0_9 = arith.constant 0 : index
    %c0_10 = arith.constant 0 : index
    %20 = vector.load %arg4[%c0_9, %c0_10] : memref<1x32xf32, #tpu.memory_space<vmem>>, vector<1x32xf32>
    %21 = arith.mulf %4, %19 : vector<1x1x32xf32>
    %22 = vector.shape_cast %20 : vector<1x32xf32> to vector<1x1x32xf32>
    %23 = arith.subf %22, %21 : vector<1x1x32xf32>
    %24 = vector.broadcast %19 : vector<1x1x32xf32> to vector<1x8x32xf32>
    %25 = arith.mulf %0, %24 : vector<1x8x32xf32>
    %26 = vector.broadcast %23 : vector<1x1x32xf32> to vector<1x8x32xf32>
    %27 = arith.addf %25, %26 : vector<1x8x32xf32>
    %c0_11 = arith.constant 0 : index
    %c0_12 = arith.constant 0 : index
    %c0_13 = arith.constant 0 : index
    %28 = vector.load %arg5[%c0_11, %c0_12, %c0_13] : memref<1x8x32xf32, #tpu.memory_space<vmem>>, vector<1x8x32xf32>
    tpu.vector_store %arg5[%c0_11, %c0_12, %c0_13], %27 {strides = array<i32>} : memref<1x8x32xf32, #tpu.memory_space<vmem>>, vector<1x8x32xf32>,
    return
  }
  func.func @transform_0(%arg0: i32, %arg1: i32) -> (i32, i32, i32) {
    %c0_i32 = arith.constant 0 : i32
    %c0_i32_0 = arith.constant 0 : i32
    return %arg1, %c0_i32, %arg0 : i32, i32, i32
  }
  func.func @transform_1(%arg0: i32, %arg1: i32) -> (i32, i32) {
    %c0_i32 = arith.constant 0 : i32
    %c0_i32_0 = arith.constant 0 : i32
    return %c0_i32, %arg0 : i32, i32
  }
  func.func @transform_2(%arg0: i32, %arg1: i32) -> (i32, i32) {
    %c0_i32 = arith.constant 0 : i32
    %c0_i32_0 = arith.constant 0 : i32
    return %c0_i32, %arg0 : i32, i32
  }
  func.func @transform_3(%arg0: i32, %arg1: i32) -> (i32, i32, i32) {
    %c0_i32 = arith.constant 0 : i32
    %c0_i32_0 = arith.constant 0 : i32
    return %arg1, %c0_i32, %arg0 : i32, i32, i32
  }
}

</mosaic_0001>

<llo_original>
// kernel: tpu_custom_call.1
$region0: #{tpu_custom_call.1}
  #allocation0 [shape = 'u32[]', space=smem, size = 0x4, offset = 0x4, fixed_abs, tag = 'smem constant byte address 0x4 - core index']
  #allocation1 [shape = 'u32[144,128]{1,0:T(1,128)}', space=vmem, size = 0x12000, scoped, tag = 'internal scratch']
  %s0 = inlined_call_operand.hbm [shape: f32[2,8,32], index: 0, kind: input, shape index: {}]
  %s1 = inlined_call_operand.vmem [shape: f32[1,32], index: 1, kind: input, shape index: {}]
  %s2 = inlined_call_operand.vmem [shape: f32[1,32], index: 2, kind: input, shape index: {}]
  %s3 = inlined_call_operand.hbm [shape: f32[2,8,32], index: 3, kind: output, shape index: {}]
  %s4 = sld [smem:[#allocation0]]
  $region49: #{tpu_custom_call.1} parent=0
    _
  %s6 = ssub.s32 1, %s4
  %s7 = scalar_select 0, %s6, %s4
  $region1: #{tpu_custom_call.1} parent=0
    #allocation2 [shape = 'u8[8192]{0}', space=vmem, size = 0x2000, scoped, tag = 'input window, operand 0']
    #allocation3 [shape = 's32[2]{0}', space=sflag, size = 0x8, scoped, tag = 'scoped memory for tpu_custom_call.1']
    #allocation4 [shape = 's32[2]{0}', space=sflag, size = 0x8, scoped, tag = 'scoped memory for tpu_custom_call.1']
    #allocation5 [shape = 'u8[8192]{0}', space=vmem, size = 0x2000, scoped, tag = 'output window, operand 0']
    %8 = vsyncpa [#allocation3], 0
    %s9 = scalar_lea.sflag [#allocation3], 1
    %10 = vsyncpa %s9, 0
    %11 = vsyncpa [#allocation4], 0
    %s12 = scalar_lea.sflag [#allocation4], 1
    %13 = vsyncpa %s12, 0
    loop: start=0, step=1, limit=4
    $region2: #{tpu_custom_call.1} parent=1 // loop_pre_header
      _
    $region3: #{tpu_custom_call.1} parent=1 // loop_header
      %s15 = sphi 0, %s19
      %p16 = scmp.ge.s32.totalorder %s15, 4
      %s22 = sphi 0, %s34
      %s23 = sphi 0, %s30
      %s24 = sphi 0, %s22
      %s25 = sphi 0, %s23
      %s26 = sphi 0, %s24
      %s27 = sphi 0, %s25
      %s39 = sphi 0, %s41
      %s42 = sphi 0, %s39
      %s43 = sphi 0, %s42
      %s59 = sphi 0, %s43
      %s65 = sphi 0, %s67
      %s68 = sphi 0, %s65
      %s69 = sphi 0, %s68
      %s85 = sphi 0, %s69
      %s91 = sphi 0, %s93
      %s94 = sphi 0, %s91
      %s95 = sphi 0, %s94
      %s111 = sphi 0, %s95
      %s119 = sphi 0, %s121
      %s122 = sphi 0, %s119
      %s123 = sphi 0, %s122
      %s139 = sphi 0, %s123
    $region4: #{tpu_custom_call.1} parent=1 // loop_header_branch
      %18 = sbr.rel (%p16) target = $region8
    $region5: #{tpu_custom_call.1} parent=1 // loop_body
      %s20 = ssub.s32 %s15, 1
      %s21 = ssub.s32 %s15, 2
      %s28 = sadd.s32 1, %s23
      %p29 = scmp.ge.s32.totalorder %s28, 2
      %s30 = scalar_select %p29, 0, %s28
      %s31 = sadd.s32 1, %s22
      %s32 = scalar_select %p29, %s31, %s22
      %p33 = scmp.ge.s32.totalorder %s32, 1
      %s34 = scalar_select %p33, 0, %s32
      %s35 = ssub.s32 %s23, %s30
      %s36 = ssub.s32 %s22, %s34
      %s37 = sor.u32 %s35, %s36
      %p38 = scmp.eq.s32.totalorder %s37, 0
      %s40 = sadd.s32 %s39, 1
      %s41 = scalar_select %p38, %s39, %s40
      %p44 = pneg %p38
      %p45 = scmp.eq.s32.totalorder %s15, 1
      %p46 = por %p44, %p45
      %p47 = scmp.ne.s32.totalorder %s39, %s42
      %p48 = scmp.eq.s32.totalorder %s15, 0
      %p49 = por %p47, %p48
      %p50 = scmp.ne.s32.totalorder %s39, %s42
      %p51 = scmp.eq.s32.totalorder %s20, 1
      %p52 = por %p50, %p51
      %p53 = scmp.ne.s32.totalorder %s42, %s43
      %p54 = scmp.eq.s32.totalorder %s20, 0
      %p55 = por %p53, %p54
      %p56 = scmp.ne.s32.totalorder %s42, %s43
      %p57 = scmp.eq.s32.totalorder %s21, 1
      %p58 = por %p56, %p57
      %p60 = scmp.ne.s32.totalorder %s43, %s59
      %p61 = scmp.eq.s32.totalorder %s21, 0
      %p62 = por %p60, %p61
      %s63 = ssub.s32 %s22, %s34
      %p64 = scmp.eq.s32.totalorder %s63, 0
      %s66 = sadd.s32 %s65, 1
      %s67 = scalar_select %p64, %s65, %s66
      %p70 = pneg %p64
      %p71 = scmp.eq.s32.totalorder %s15, 1
      %p72 = por %p70, %p71
      %p73 = scmp.ne.s32.totalorder %s65, %s68
      %p74 = scmp.eq.s32.totalorder %s15, 0
      %p75 = por %p73, %p74
      %p76 = scmp.ne.s32.totalorder %s65, %s68
      %p77 = scmp.eq.s32.totalorder %s20, 1
      %p78 = por %p76, %p77
      %p79 = scmp.ne.s32.totalorder %s68, %s69
      %p80 = scmp.eq.s32.totalorder %s20, 0
      %p81 = por %p79, %p80
      %p82 = scmp.ne.s32.totalorder %s68, %s69
      %p83 = scmp.eq.s32.totalorder %s21, 1
      %p84 = por %p82, %p83
      %p86 = scmp.ne.s32.totalorder %s69, %s85
      %p87 = scmp.eq.s32.totalorder %s21, 0
      %p88 = por %p86, %p87
      %s89 = ssub.s32 %s22, %s34
      %p90 = scmp.eq.s32.totalorder %s89, 0
      %s92 = sadd.s32 %s91, 1
      %s93 = scalar_select %p90, %s91, %s92
      %p96 = pneg %p90
      %p97 = scmp.eq.s32.totalorder %s15, 1
      %p98 = por %p96, %p97
      %p99 = scmp.ne.s32.totalorder %s91, %s94
      %p100 = scmp.eq.s32.totalorder %s15, 0
      %p101 = por %p99, %p100
      %p102 = scmp.ne.s32.totalorder %s91, %s94
      %p103 = scmp.eq.s32.totalorder %s20, 1
      %p104 = por %p102, %p103
      %p105 = scmp.ne.s32.totalorder %s94, %s95
      %p106 = scmp.eq.s32.totalorder %s20, 0
      %p107 = por %p105, %p106
      %p108 = scmp.ne.s32.totalorder %s94, %s95
      %p109 = scmp.eq.s32.totalorder %s21, 1
      %p110 = por %p108, %p109
      %p112 = scmp.ne.s32.totalorder %s95, %s111
      %p113 = scmp.eq.s32.totalorder %s21, 0
      %p114 = por %p112, %p113
      %s115 = ssub.s32 %s23, %s30
      %s116 = ssub.s32 %s22, %s34
      %s117 = sor.u32 %s115, %s116
      %p118 = scmp.eq.s32.totalorder %s117, 0
      %s120 = sadd.s32 %s119, 1
      %s121 = scalar_select %p118, %s119, %s120
      %p124 = pneg %p118
      %p125 = scmp.eq.s32.totalorder %s15, 1
      %p126 = por %p124, %p125
      %p127 = scmp.ne.s32.totalorder %s119, %s122
      %p128 = scmp.eq.s32.totalorder %s15, 0
      %p129 = por %p127, %p128
      %p130 = scmp.ne.s32.totalorder %s119, %s122
      %p131 = scmp.eq.s32.totalorder %s20, 1
      %p132 = por %p130, %p131
      %p133 = scmp.ne.s32.totalorder %s122, %s123
      %p134 = scmp.eq.s32.totalorder %s20, 0
      %p135 = por %p133, %p134
      %p136 = scmp.ne.s32.totalorder %s122, %s123
      %p137 = scmp.eq.s32.totalorder %s21, 1
      %p138 = por %p136, %p137
      %p140 = scmp.ne.s32.totalorder %s123, %s139
      %p141 = scmp.eq.s32.totalorder %s21, 0
      %p142 = por %p140, %p141
      %p143 = scmp.le.s32.totalorder 1, %s15
      %p144 = scmp.lt.s32.totalorder %s15, 3
      %p145 = pnand %p143, %p144
      %p146 = pneg %p145
      // Predicated region
      $region9: #{tpu_custom_call.1} parent=5 // pred_check
        _
      $region10: #{tpu_custom_call.1} parent=5 // pred_check_branch
        %148 = sbr.rel (%p145) target = $region12
      $region11: #{tpu_custom_call.1} parent=5 // pred_region
        %s149 = ssub.s32 %s15, 1
        // Predicated region
        $region13: #{tpu_custom_call.1} parent=11 // pred_check
          %p150 = pneg %p81
        $region14: #{tpu_custom_call.1} parent=11 // pred_check_branch
          %152 = sbr.rel (%p150) target = $region16
        $region15: #{tpu_custom_call.1} parent=11 // pred_region
          %p153 = scmp.lt.s32.totalorder %s24, 0
          %s154 = scalar_select %p153, %s24, 0
          %s155 = scalar_lea.vmem %s1, %s154
        $region16: #{tpu_custom_call.1} parent=11 // pred_fallthru
          _
        // Predicated region
        $region17: #{tpu_custom_call.1} parent=11 // pred_check
          %p156 = pneg %p107
        $region18: #{tpu_custom_call.1} parent=11 // pred_check_branch
          %158 = sbr.rel (%p156) target = $region20
        $region19: #{tpu_custom_call.1} parent=11 // pred_region
          %p159 = scmp.lt.s32.totalorder %s24, 0
          %s160 = scalar_select %p159, %s24, 0
          %s161 = scalar_lea.vmem %s2, %s160
        $region20: #{tpu_custom_call.1} parent=11 // pred_fallthru
          _
      $region12: #{tpu_custom_call.1} parent=5 // pred_fallthru
        _
      %p162 = scmp.lt.s32.totalorder %s15, 2
      // Predicated region
      $region21: #{tpu_custom_call.1} parent=5 // pred_check
        %p163 = pneg %p162
      $region22: #{tpu_custom_call.1} parent=5 // pred_check_branch
        %165 = sbr.rel (%p163) target = $region24
      $region23: #{tpu_custom_call.1} parent=5 // pred_region
        // Predicated region
        $region25: #{tpu_custom_call.1} parent=23 // pred_check
          %p166 = pneg %p49
        $region26: #{tpu_custom_call.1} parent=23 // pred_check_branch
          %168 = sbr.rel (%p166) target = $region28
        $region27: #{tpu_custom_call.1} parent=23 // pred_region
          %s169 = sand.u32 %s39, 1
          %s170 = scalar_lea.sflag [#allocation3], %s169
          %s171 = sand.u32 %s39, 1
          %s172 = smul.addr %s171, 8
          %s173 = scalar_lea.vmem [#allocation2], %s172
          %s175 = ssub.s32 128, 128
          %176 = vsyncadd %s170, %s175
          %s177 = sadd.s32 %s22, %s23
          %s178 = smul.addr %s177, 128
          %s179 = scalar_lea.hbm %s0, %s178
          %s181 = sshll.u32 %s173, 4
          %s182 = int_to_ptr.vmem [resolvable:$true] %s181
          %184 = dma.hbm_to_vmem [thread:$0]  %s179, 128, %s182, %s170
        $region28: #{tpu_custom_call.1} parent=23 // pred_fallthru
          _
      $region24: #{tpu_custom_call.1} parent=5 // pred_fallthru
        _
      %p185 = scmp.le.s32.totalorder 1, %s15
      %p186 = scmp.lt.s32.totalorder %s15, 3
      %p187 = pnand %p185, %p186
      %p188 = pneg %p187
      // Predicated region
      $region29: #{tpu_custom_call.1} parent=5 // pred_check
        _
      $region30: #{tpu_custom_call.1} parent=5 // pred_check_branch
        %190 = sbr.rel (%p187) target = $region32
      $region31: #{tpu_custom_call.1} parent=5 // pred_region
        %s191 = ssub.s32 %s15, 1
        %s192 = sand.u32 %s42, 1
        %s193 = scalar_lea.sflag [#allocation3], %s192
        %s194 = sand.u32 %s42, 1
        %s195 = smul.addr %s194, 8
        %s196 = scalar_lea.vmem [#allocation2], %s195
        // Predicated region
        $region33: #{tpu_custom_call.1} parent=31 // pred_check
          %p197 = pneg %p55
        $region34: #{tpu_custom_call.1} parent=31 // pred_check_branch
          %199 = sbr.rel (%p197) target = $region36
        $region35: #{tpu_custom_call.1} parent=31 // pred_region
          %200 = dma.done %s193, 128
        $region36: #{tpu_custom_call.1} parent=31 // pred_fallthru
          _
        %s201 = sand.u32 %s42, 1
        %s202 = scalar_lea.sflag [#allocation3], %s201
        %s203 = sand.u32 %s42, 1
        %s204 = smul.addr %s203, 8
        %s205 = scalar_lea.vmem [#allocation2], %s204
        %p206 = pneg %p55
        %p207 = pneg %p52
        %p208 = scmp.lt.s32.totalorder %s24, 0
        %s209 = scalar_select %p208, %s24, 0
        %s210 = scalar_lea.vmem %s1, %s209
        %p211 = pneg %p81
        %p212 = pneg %p78
        %p213 = scmp.lt.s32.totalorder %s24, 0
        %s214 = scalar_select %p213, %s24, 0
        %s215 = scalar_lea.vmem %s2, %s214
        %p216 = pneg %p107
        %p217 = pneg %p104
        %p218 = pneg %p135
        %p219 = pneg %p132
        %s220 = sand.u32 %s122, 1
        %s221 = scalar_lea.sflag [#allocation4], %s220
        %s222 = sand.u32 %s122, 1
        %s223 = smul.addr %s222, 8
        %s224 = scalar_lea.vmem [#allocation5], %s223
        %p225 = scmp.lt.s32.totalorder %s24, 0
        %s226 = scalar_select %p225, %s24, 0
        %s227 = scalar_lea.vmem %s1, %s226
        %p228 = scmp.lt.s32.totalorder %s24, 0
        %s229 = scalar_select %p228, %s24, 0
        %s230 = scalar_lea.vmem %s2, %s229
        %v231 = vld [vmem:[%s196] sm:$0xff]
        %vm232 = vcmask 261120
        %v233 = vsel %vm232, %v231, 0.0
        %v234 = vrot.slane %v233, 4
        %v235 = vadd.f32 %v233, %v234
        %v236 = vrot.slane %v235, 2
        %v237 = vadd.f32 %v235, %v236
        %v238 = vrot.slane %v237, 1
        %v239 = vadd.f32 %v237, %v238
        %v240 = vrcp.pop 8.0
        %v241 = vmul.f32 %v239, %v240
        %v242 = vmul.f32 %v231, %v231
        %v243 = vsel %vm232, %v242, 0.0
        %v244 = vrot.slane %v243, 4
        %v245 = vadd.f32 %v243, %v244
        %v246 = vrot.slane %v245, 2
        %v247 = vadd.f32 %v245, %v246
        %v248 = vrot.slane %v247, 1
        %v249 = vadd.f32 %v247, %v248
        %v250 = vmul.f32 %v249, %v240
        %v251 = vmul.f32 %v241, %v241
        %v252 = vsub.f32 %v250, %v251
        %v253 = vmax.f32 %v252, 0.0
        %v254 = vadd.f32 %v253, 1e-05
        %v255 = vrsqrt.pop %v254
        %v256 = vld [vmem:[%s227] sm:$0x1]
        %v257 = vmul.f32 %v255, %v256
        %v258 = vld [vmem:[%s230] sm:$0x1]
        %v259 = vmul.f32 %v241, %v257
        %v260 = vsub.f32 %v258, %v259
        %v261 = vlaneseq
        %v262 = vshrl.u32 %v261, 7
        %v263 = vsub.s32 0, %v262
        %v264 = vrot.slane %v257, %v263
        %v265 = vmul.f32 %v231, %v264
        %v267 = vlaneseq
        %v268 = vshrl.u32 %v267, 7
        %v269 = vsub.s32 0, %v268
        %v270 = vrot.slane %v260, %v269
        %v272 = vadd.f32 %v265, %v270
        %273 = vst.msk [vmem:[%s224] sm:$0xff] %vm232, %v272
        %s274 = sand.u32 %s122, 1
        %s275 = scalar_lea.sflag [#allocation4], %s274
        %s276 = sand.u32 %s122, 1
        %s277 = smul.addr %s276, 8
        %s278 = scalar_lea.vmem [#allocation5], %s277
        // Predicated region
        $region37: #{tpu_custom_call.1} parent=31 // pred_check
          %p279 = pneg %p132
        $region38: #{tpu_custom_call.1} parent=31 // pred_check_branch
          %281 = sbr.rel (%p279) target = $region40
        $region39: #{tpu_custom_call.1} parent=31 // pred_region
          %s283 = ssub.s32 128, 128
          %284 = vsyncadd %s275, %s283
          %s285 = sadd.s32 %s24, %s25
          %s286 = smul.addr %s285, 128
          %s287 = scalar_lea.hbm %s3, %s286
          %s289 = sshll.u32 %s278, 4
          %s290 = int_to_ptr.vmem [resolvable:$true] %s289
          %292 = dma.vmem_to_hbm [thread:$0]  %s290, 128, %s287, %s275
        $region40: #{tpu_custom_call.1} parent=31 // pred_fallthru
          _
      $region32: #{tpu_custom_call.1} parent=5 // pred_fallthru
        _
      %p293 = scmp.le.s32.totalorder 2, %s15
      // Predicated region
      $region41: #{tpu_custom_call.1} parent=5 // pred_check
        %p294 = pneg %p293
      $region42: #{tpu_custom_call.1} parent=5 // pred_check_branch
        %296 = sbr.rel (%p294) target = $region44
      $region43: #{tpu_custom_call.1} parent=5 // pred_region
        %s297 = ssub.s32 %s15, 2
        // Predicated region
        $region45: #{tpu_custom_call.1} parent=43 // pred_check
          %p298 = pneg %p138
        $region46: #{tpu_custom_call.1} parent=43 // pred_check_branch
          %300 = sbr.rel (%p298) target = $region48
        $region47: #{tpu_custom_call.1} parent=43 // pred_region
          %s301 = sand.u32 %s123, 1
          %s302 = scalar_lea.sflag [#allocation4], %s301
          %s303 = sand.u32 %s123, 1
          %s304 = smul.addr %s303, 8
          %s305 = scalar_lea.vmem [#allocation5], %s304
          %306 = dma.done %s302, 128
        $region48: #{tpu_custom_call.1} parent=43 // pred_fallthru
          _
      $region44: #{tpu_custom_call.1} parent=5 // pred_fallthru
        _
    $region6: #{tpu_custom_call.1} parent=1 // loop_footer
      %s19 = sadd.s32 1, %s15
    $region7: #{tpu_custom_call.1} parent=1 // loop_footer_branch
      %14 = sbr.rel target = $region3
    $region8: #{tpu_custom_call.1} parent=1 // loop_exit
      _
    %307 = vsyncpa [#allocation3], 1
    %s308 = scalar_lea.sflag [#allocation3], 1
    %309 = vsyncpa %s308, 1
    %310 = vsyncpa [#allocation4], 1
    %s311 = scalar_lea.sflag [#allocation4], 1
    %312 = vsyncpa %s311, 1

</llo_original>
